<compile_context>
chip_gen: v7x
topology: tpu7x:2x2x1
jax: 0.10.0
libtpu: 0.0.40
codegen_flags: <defaults>
</compile_context>

<pallas_src>
import math

import numpy as np
import jax
import jax.numpy as jnp
from jax.experimental import pallas as pl
from jax.experimental.pallas import tpu as pltpu


# ------------------------------ fused kernel ---------------------------------

def _make_titans_kernel(num_heads):
    def kernel(x_ref, A_ref, c_ref, vo_ref, wg_ref, bg_ref, o_ref):
        x = x_ref[...]                                           # (B, E) f32

        # Per-head attention; scores come straight from x via the folded A/c.
        attn = None
        for h in range(num_heads):                               # unrolled on purpose
            s = jnp.dot(x, A_ref[h], preferred_element_type=jnp.float32) + c_ref[h]  # (B, M)
            m = jnp.max(s, axis=-1, keepdims=True)
            e = jnp.exp(s - m)
            inv = pl.reciprocal(jnp.sum(e, axis=-1, keepdims=True), approx=True)
            w = e * inv                                          # softmax weights (B, M)
            part = jnp.dot(w, vo_ref[h], preferred_element_type=jnp.float32)         # (B, E)
            attn = part if attn is None else attn + part
        # attn == MultiheadAttention output (out-proj + bias already folded in).

        # gate = sigmoid(x @ Wg_x + attn @ Wg_attn + bg)  (no concat)
        g = (jnp.dot(x, wg_ref[0], preferred_element_type=jnp.float32)
             + jnp.dot(attn, wg_ref[1], preferred_element_type=jnp.float32)
             + bg_ref[...])
        # numerically-safe sigmoid (exp of a non-positive value only)
        eg = jnp.exp(-jnp.abs(g))
        r = pl.reciprocal(1.0 + eg, approx=True)
        gate = jnp.where(g >= 0, r, eg * r)

        o_ref[...] = gate * attn

    return kernel


def titans_memory_mac_forward(x, kp, *, num_heads):
    """x: (B, E) f32, kp: kernel-layout params (see prepare_kernel_params)."""
    B, E = x.shape
    assert E % num_heads == 0
    kernel = _make_titans_kernel(num_heads)
    vmem = pl.BlockSpec(memory_space=pltpu.MemorySpace.VMEM)     # whole array in VMEM
    return pl.pallas_call(
        kernel,
        out_shape=jax.ShapeDtypeStruct((B, E), jnp.float32),
        in_specs=[vmem] * 6,
        out_specs=vmem,
        # grid=() — single step; at these sizes any grid only adds per-step
        # pipeline overhead.  TODO(synk): add a "parallel" batch grid axis for
        # large B (v7x megacore).
    )(x, kp["A"], kp["c"], kp["vo"], kp["wg"], kp["bg"])


# ------------------------------ parameters -----------------------------------

def init_params(key, memory_size, embedding_dim, num_heads):
    """Torch-layout parameters (same conventions as nn.MultiheadAttention / nn.Linear)."""
    del num_heads
    E = embedding_dim
    ks = jax.random.split(key, 7)

    def normal(k, shape, scale):
        return (scale * jax.random.normal(k, shape)).astype(jnp.float32)

    p = {}
    p["memory"] = normal(ks[0], (memory_size, E), 1.0)            # nn.Parameter(randn)
    p["in_proj_w"] = normal(ks[1], (3 * E, E), 1.0 / np.sqrt(E))  # (3E, E): [Wq; Wk; Wv]
    p["in_proj_b"] = normal(ks[2], (3 * E,), 0.02)
    p["out_proj_w"] = normal(ks[3], (E, E), 1.0 / np.sqrt(E))
    p["out_proj_b"] = normal(ks[4], (E,), 0.02)
    p["gate_w"] = normal(ks[5], (E, 2 * E), 1.0 / np.sqrt(2 * E))  # nn.Linear(2E, E).weight
    p["gate_b"] = normal(ks[6], (E,), 0.02)
    return p


def prepare_kernel_params(p, num_heads):
    """One-time host-side prep (f64): hoist every x-independent computation out
    of the per-forward kernel and lay out weights so the kernel only does
    row-major (M,K)@(K,N) dots with no concats and no sub-vreg lane slices."""
    E = int(p["out_proj_w"].shape[0])
    hd = E // num_heads
    scale = 1.0 / math.sqrt(hd)

    mem = np.asarray(p["memory"], np.float64)
    Wi = np.asarray(p["in_proj_w"], np.float64)
    bi = np.asarray(p["in_proj_b"], np.float64)
    Wo = np.asarray(p["out_proj_w"], np.float64)
    bo = np.asarray(p["out_proj_b"], np.float64)
    Wg = np.asarray(p["gate_w"], np.float64)
    bg = np.asarray(p["gate_b"], np.float64)

    Wq, Wk, Wv = Wi[:E], Wi[E:2 * E], Wi[2 * E:]
    bq, bk, bv = bi[:E], bi[E:2 * E], bi[2 * E:]

    # Memory-side projections depend only on parameters — precompute.
    k = mem @ Wk.T + bk                                           # (M, E)
    v = mem @ Wv.T + bv                                           # (M, E)

    A_l, c_l, vo_l = [], [], []
    for h in range(num_heads):
        sl = slice(h * hd, (h + 1) * hd)
        kh, vh = k[:, sl], v[:, sl]                               # (M, hd)
        A_l.append(scale * (Wq.T[:, sl] @ kh.T))                  # (E, M)  scores weight
        c_l.append(scale * (bq[sl] @ kh.T))                       # (M,)    scores bias
        vo_l.append(vh @ Wo.T[sl, :] + bo / num_heads)            # (M, E)  value ⊗ out-proj (+bo/H)

    return {
        "A": jnp.asarray(np.stack(A_l), jnp.float32),             # (H, E, M)
        "c": jnp.asarray(np.stack(c_l)[:, None, :], jnp.float32), # (H, 1, M)
        "vo": jnp.asarray(np.stack(vo_l), jnp.float32),           # (H, M, E)
        "wg": jnp.asarray(np.stack([Wg.T[:E], Wg.T[E:]]), jnp.float32),  # (2, E, E)
        "bg": jnp.asarray(bg.reshape(1, E), jnp.float32),         # (1, E)
    }


# -------------------------- NumPy reference (f64) -----------------------------

def ref_forward(x, p, num_heads):
    x = np.asarray(x, np.float64)
    E = x.shape[1]
    hd = E // num_heads
    memory = np.asarray(p["memory"], np.float64)
    Wi = np.asarray(p["in_proj_w"], np.float64)
    bi = np.asarray(p["in_proj_b"], np.float64)
    Wo = np.asarray(p["out_proj_w"], np.float64)
    bo = np.asarray(p["out_proj_b"], np.float64)
    Wg = np.asarray(p["gate_w"], np.float64)
    bg = np.asarray(p["gate_b"], np.float64)

    q = x @ Wi[:E].T + bi[:E]
    k = memory @ Wi[E:2 * E].T + bi[E:2 * E]
    v = memory @ Wi[2 * E:].T + bi[2 * E:]
    outs = []
    for h in range(num_heads):
        sl = slice(h * hd, (h + 1) * hd)
        s = (q[:, sl] / np.sqrt(hd)) @ k[:, sl].T
        s = s - s.max(-1, keepdims=True)
        w = np.exp(s)
        w = w / w.sum(-1, keepdims=True)
        outs.append(w @ v[:, sl])
    attn = np.concatenate(outs, -1) @ Wo.T + bo
    gate = 1.0 / (1.0 + np.exp(-(np.concatenate([x, attn], -1) @ Wg.T + bg)))
    return gate * attn


# --------------------------------- main ---------------------------------------

if __name__ == "__main__":
    B, MEM, E, NH = 2, 16, 32, 4
    key = jax.random.PRNGKey(0)
    k_x, k_p = jax.random.split(key)
    x = jax.random.normal(k_x, (B, E), dtype=jnp.float32)

    params = init_params(k_p, MEM, E, NH)             # torch-layout (for reference)
    kparams = prepare_kernel_params(params, NH)       # kernel-layout (for pallas)

    fwd = jax.jit(lambda xx, kp: titans_memory_mac_forward(xx, kp, num_heads=NH))
    out = jax.block_until_ready(fwd(x, kparams))
    assert out.shape == (B, E), out.shape

    ref = ref_forward(np.asarray(x), params, NH)
    np.testing.assert_allclose(np.asarray(out), ref, rtol=5e-2, atol=5e-2)
    print("KERNEL_OK")
</pallas_src>

<mosaic_0001>
module attributes {stable_mosaic.version = 11 : i64} {
  func.func @kernel(%arg0: memref<2x32xf32, #tpu.memory_space<vmem>>, %arg1: memref<4x32x16xf32, #tpu.memory_space<vmem>>, %arg2: memref<4x1x16xf32, #tpu.memory_space<vmem>>, %arg3: memref<4x16x32xf32, #tpu.memory_space<vmem>>, %arg4: memref<2x32x32xf32, #tpu.memory_space<vmem>>, %arg5: memref<1x32xf32, #tpu.memory_space<vmem>>, %arg6: memref<2x32xf32, #tpu.memory_space<vmem>>) attributes {dimension_semantics = [], scalar_prefetch = 0 : i64, scratch_operands = 0 : i64, tpu.core_type = #tpu.core_type<tc>} {
    %c0 = arith.constant 0 : index
    %c0_0 = arith.constant 0 : index
    %0 = vector.load %arg0[%c0, %c0_0] : memref<2x32xf32, #tpu.memory_space<vmem>>, vector<2x32xf32>
    %c0_1 = arith.constant 0 : index
    %c0_2 = arith.constant 0 : index
    %c0_3 = arith.constant 0 : index
    %1 = vector.load %arg1[%c0_1, %c0_2, %c0_3] : memref<4x32x16xf32, #tpu.memory_space<vmem>>, vector<1x32x16xf32>
    %2 = vector.shape_cast %1 : vector<1x32x16xf32> to vector<32x16xf32>
    %cst = arith.constant dense<0.000000e+00> : vector<2x16xf32>
    %3 = tpu.matmul %0, %2, %cst {dimension_numbers = #tpu.dot_dimension_numbers<[1], [0], [0], [1], [0, 0, 1, 1], [], []>} : vector<2x32xf32>, vector<32x16xf32>, vector<2x16xf32> -> vector<2x16xf32>
    %c0_4 = arith.constant 0 : index
    %c0_5 = arith.constant 0 : index
    %c0_6 = arith.constant 0 : index
    %4 = vector.load %arg2[%c0_4, %c0_5, %c0_6] : memref<4x1x16xf32, #tpu.memory_space<vmem>>, vector<1x1x16xf32>
    %5 = vector.shape_cast %4 : vector<1x1x16xf32> to vector<1x16xf32>
    %6 = vector.broadcast %5 : vector<1x16xf32> to vector<2x16xf32>
    %7 = arith.addf %3, %6 : vector<2x16xf32>
    %cst_7 = arith.constant dense<0xFF800000> : vector<2xf32>
    %8 = vector.multi_reduction <maximumf>, %7, %cst_7 [1] : vector<2x16xf32> to vector<2xf32>
    %9 = vector.shape_cast %8 : vector<2xf32> to vector<2x1xf32>
    %10 = vector.broadcast %9 : vector<2x1xf32> to vector<2x16xf32>
    %11 = arith.subf %7, %10 : vector<2x16xf32>
    %12 = math.exp %11 : vector<2x16xf32>
    %cst_8 = arith.constant dense<0.000000e+00> : vector<2xf32>
    %13 = vector.multi_reduction <add>, %12, %cst_8 [1] : vector<2x16xf32> to vector<2xf32>
    %14 = vector.shape_cast %13 : vector<2xf32> to vector<2x1xf32>
    %15 = tpu.reciprocal %14 {approx = true} : vector<2x1xf32> -> vector<2x1xf32>
    %16 = vector.broadcast %15 : vector<2x1xf32> to vector<2x16xf32>
    %17 = arith.mulf %12, %16 : vector<2x16xf32>
    %c0_9 = arith.constant 0 : index
    %c0_10 = arith.constant 0 : index
    %c0_11 = arith.constant 0 : index
    %18 = vector.load %arg3[%c0_9, %c0_10, %c0_11] : memref<4x16x32xf32, #tpu.memory_space<vmem>>, vector<1x16x32xf32>
    %19 = vector.shape_cast %18 : vector<1x16x32xf32> to vector<16x32xf32>
    %cst_12 = arith.constant dense<0.000000e+00> : vector<2x32xf32>
    %20 = tpu.matmul %17, %19, %cst_12 {dimension_numbers = #tpu.dot_dimension_numbers<[1], [0], [0], [1], [0, 0, 1, 1], [], []>} : vector<2x16xf32>, vector<16x32xf32>, vector<2x32xf32> -> vector<2x32xf32>
    %c1 = arith.constant 1 : index
    %c0_13 = arith.constant 0 : index
    %c0_14 = arith.constant 0 : index
    %21 = vector.load %arg1[%c1, %c0_13, %c0_14] : memref<4x32x16xf32, #tpu.memory_space<vmem>>, vector<1x32x16xf32>
    %22 = vector.shape_cast %21 : vector<1x32x16xf32> to vector<32x16xf32>
    %cst_15 = arith.constant dense<0.000000e+00> : vector<2x16xf32>
    %23 = tpu.matmul %0, %22, %cst_15 {dimension_numbers = #tpu.dot_dimension_numbers<[1], [0], [0], [1], [0, 0, 1, 1], [], []>} : vector<2x32xf32>, vector<32x16xf32>, vector<2x16xf32> -> vector<2x16xf32>
    %c1_16 = arith.constant 1 : index
    %c0_17 = arith.constant 0 : index
    %c0_18 = arith.constant 0 : index
    %24 = vector.load %arg2[%c1_16, %c0_17, %c0_18] : memref<4x1x16xf32, #tpu.memory_space<vmem>>, vector<1x1x16xf32>
    %25 = vector.shape_cast %24 : vector<1x1x16xf32> to vector<1x16xf32>
    %26 = vector.broadcast %25 : vector<1x16xf32> to vector<2x16xf32>
    %27 = arith.addf %23, %26 : vector<2x16xf32>
    %cst_19 = arith.constant dense<0xFF800000> : vector<2xf32>
    %28 = vector.multi_reduction <maximumf>, %27, %cst_19 [1] : vector<2x16xf32> to vector<2xf32>
    %29 = vector.shape_cast %28 : vector<2xf32> to vector<2x1xf32>
    %30 = vector.broadcast %29 : vector<2x1xf32> to vector<2x16xf32>
    %31 = arith.subf %27, %30 : vector<2x16xf32>
    %32 = math.exp %31 : vector<2x16xf32>
    %cst_20 = arith.constant dense<0.000000e+00> : vector<2xf32>
    %33 = vector.multi_reduction <add>, %32, %cst_20 [1] : vector<2x16xf32> to vector<2xf32>
    %34 = vector.shape_cast %33 : vector<2xf32> to vector<2x1xf32>
    %35 = tpu.reciprocal %34 {approx = true} : vector<2x1xf32> -> vector<2x1xf32>
    %36 = vector.broadcast %35 : vector<2x1xf32> to vector<2x16xf32>
    %37 = arith.mulf %32, %36 : vector<2x16xf32>
    %c1_21 = arith.constant 1 : index
    %c0_22 = arith.constant 0 : index
    %c0_23 = arith.constant 0 : index
    %38 = vector.load %arg3[%c1_21, %c0_22, %c0_23] : memref<4x16x32xf32, #tpu.memory_space<vmem>>, vector<1x16x32xf32>
    %39 = vector.shape_cast %38 : vector<1x16x32xf32> to vector<16x32xf32>
    %cst_24 = arith.constant dense<0.000000e+00> : vector<2x32xf32>
    %40 = tpu.matmul %37, %39, %cst_24 {dimension_numbers = #tpu.dot_dimension_numbers<[1], [0], [0], [1], [0, 0, 1, 1], [], []>} : vector<2x16xf32>, vector<16x32xf32>, vector<2x32xf32> -> vector<2x32xf32>
    %41 = arith.addf %20, %40 : vector<2x32xf32>
    %c2 = arith.constant 2 : index
    %c0_25 = arith.constant 0 : index
    %c0_26 = arith.constant 0 : index
    %42 = vector.load %arg1[%c2, %c0_25, %c0_26] : memref<4x32x16xf32, #tpu.memory_space<vmem>>, vector<1x32x16xf32>
    %43 = vector.shape_cast %42 : vector<1x32x16xf32> to vector<32x16xf32>
    %cst_27 = arith.constant dense<0.000000e+00> : vector<2x16xf32>
    %44 = tpu.matmul %0, %43, %cst_27 {dimension_numbers = #tpu.dot_dimension_numbers<[1], [0], [0], [1], [0, 0, 1, 1], [], []>} : vector<2x32xf32>, vector<32x16xf32>, vector<2x16xf32> -> vector<2x16xf32>
    %c2_28 = arith.constant 2 : index
    %c0_29 = arith.constant 0 : index
    %c0_30 = arith.constant 0 : index
    %45 = vector.load %arg2[%c2_28, %c0_29, %c0_30] : memref<4x1x16xf32, #tpu.memory_space<vmem>>, vector<1x1x16xf32>
    %46 = vector.shape_cast %45 : vector<1x1x16xf32> to vector<1x16xf32>
    %47 = vector.broadcast %46 : vector<1x16xf32> to vector<2x16xf32>
    %48 = arith.addf %44, %47 : vector<2x16xf32>
    %cst_31 = arith.constant dense<0xFF800000> : vector<2xf32>
    %49 = vector.multi_reduction <maximumf>, %48, %cst_31 [1] : vector<2x16xf32> to vector<2xf32>
    %50 = vector.shape_cast %49 : vector<2xf32> to vector<2x1xf32>
    %51 = vector.broadcast %50 : vector<2x1xf32> to vector<2x16xf32>
    %52 = arith.subf %48, %51 : vector<2x16xf32>
    %53 = math.exp %52 : vector<2x16xf32>
    %cst_32 = arith.constant dense<0.000000e+00> : vector<2xf32>
    %54 = vector.multi_reduction <add>, %53, %cst_32 [1] : vector<2x16xf32> to vector<2xf32>
    %55 = vector.shape_cast %54 : vector<2xf32> to vector<2x1xf32>
    %56 = tpu.reciprocal %55 {approx = true} : vector<2x1xf32> -> vector<2x1xf32>
    %57 = vector.broadcast %56 : vector<2x1xf32> to vector<2x16xf32>
    %58 = arith.mulf %53, %57 : vector<2x16xf32>
    %c2_33 = arith.constant 2 : index
    %c0_34 = arith.constant 0 : index
    %c0_35 = arith.constant 0 : index
    %59 = vector.load %arg3[%c2_33, %c0_34, %c0_35] : memref<4x16x32xf32, #tpu.memory_space<vmem>>, vector<1x16x32xf32>
    %60 = vector.shape_cast %59 : vector<1x16x32xf32> to vector<16x32xf32>
    %cst_36 = arith.constant dense<0.000000e+00> : vector<2x32xf32>
    %61 = tpu.matmul %58, %60, %cst_36 {dimension_numbers = #tpu.dot_dimension_numbers<[1], [0], [0], [1], [0, 0, 1, 1], [], []>} : vector<2x16xf32>, vector<16x32xf32>, vector<2x32xf32> -> vector<2x32xf32>
    %62 = arith.addf %41, %61 : vector<2x32xf32>
    %c3 = arith.constant 3 : index
    %c0_37 = arith.constant 0 : index
    %c0_38 = arith.constant 0 : index
    %63 = vector.load %arg1[%c3, %c0_37, %c0_38] : memref<4x32x16xf32, #tpu.memory_space<vmem>>, vector<1x32x16xf32>
    %64 = vector.shape_cast %63 : vector<1x32x16xf32> to vector<32x16xf32>
    %cst_39 = arith.constant dense<0.000000e+00> : vector<2x16xf32>
    %65 = tpu.matmul %0, %64, %cst_39 {dimension_numbers = #tpu.dot_dimension_numbers<[1], [0], [0], [1], [0, 0, 1, 1], [], []>} : vector<2x32xf32>, vector<32x16xf32>, vector<2x16xf32> -> vector<2x16xf32>
    %c3_40 = arith.constant 3 : index
    %c0_41 = arith.constant 0 : index
    %c0_42 = arith.constant 0 : index
    %66 = vector.load %arg2[%c3_40, %c0_41, %c0_42] : memref<4x1x16xf32, #tpu.memory_space<vmem>>, vector<1x1x16xf32>
    %67 = vector.shape_cast %66 : vector<1x1x16xf32> to vector<1x16xf32>
    %68 = vector.broadcast %67 : vector<1x16xf32> to vector<2x16xf32>
    %69 = arith.addf %65, %68 : vector<2x16xf32>
    %cst_43 = arith.constant dense<0xFF800000> : vector<2xf32>
    %70 = vector.multi_reduction <maximumf>, %69, %cst_43 [1] : vector<2x16xf32> to vector<2xf32>
    %71 = vector.shape_cast %70 : vector<2xf32> to vector<2x1xf32>
    %72 = vector.broadcast %71 : vector<2x1xf32> to vector<2x16xf32>
    %73 = arith.subf %69, %72 : vector<2x16xf32>
    %74 = math.exp %73 : vector<2x16xf32>
    %cst_44 = arith.constant dense<0.000000e+00> : vector<2xf32>
    %75 = vector.multi_reduction <add>, %74, %cst_44 [1] : vector<2x16xf32> to vector<2xf32>
    %76 = vector.shape_cast %75 : vector<2xf32> to vector<2x1xf32>
    %77 = tpu.reciprocal %76 {approx = true} : vector<2x1xf32> -> vector<2x1xf32>
    %78 = vector.broadcast %77 : vector<2x1xf32> to vector<2x16xf32>
    %79 = arith.mulf %74, %78 : vector<2x16xf32>
    %c3_45 = arith.constant 3 : index
    %c0_46 = arith.constant 0 : index
    %c0_47 = arith.constant 0 : index
    %80 = vector.load %arg3[%c3_45, %c0_46, %c0_47] : memref<4x16x32xf32, #tpu.memory_space<vmem>>, vector<1x16x32xf32>
    %81 = vector.shape_cast %80 : vector<1x16x32xf32> to vector<16x32xf32>
    %cst_48 = arith.constant dense<0.000000e+00> : vector<2x32xf32>
    %82 = tpu.matmul %79, %81, %cst_48 {dimension_numbers = #tpu.dot_dimension_numbers<[1], [0], [0], [1], [0, 0, 1, 1], [], []>} : vector<2x16xf32>, vector<16x32xf32>, vector<2x32xf32> -> vector<2x32xf32>
    %83 = arith.addf %62, %82 : vector<2x32xf32>
    %c0_49 = arith.constant 0 : index
    %c0_50 = arith.constant 0 : index
    %c0_51 = arith.constant 0 : index
    %84 = vector.load %arg4[%c0_49, %c0_50, %c0_51] : memref<2x32x32xf32, #tpu.memory_space<vmem>>, vector<1x32x32xf32>
    %85 = vector.shape_cast %84 : vector<1x32x32xf32> to vector<32x32xf32>
    %cst_52 = arith.constant dense<0.000000e+00> : vector<2x32xf32>
    %86 = tpu.matmul %0, %85, %cst_52 {dimension_numbers = #tpu.dot_dimension_numbers<[1], [0], [0], [1], [0, 0, 1, 1], [], []>} : vector<2x32xf32>, vector<32x32xf32>, vector<2x32xf32> -> vector<2x32xf32>
    %c1_53 = arith.constant 1 : index
    %c0_54 = arith.constant 0 : index
    %c0_55 = arith.constant 0 : index
    %87 = vector.load %arg4[%c1_53, %c0_54, %c0_55] : memref<2x32x32xf32, #tpu.memory_space<vmem>>, vector<1x32x32xf32>
    %88 = vector.shape_cast %87 : vector<1x32x32xf32> to vector<32x32xf32>
    %cst_56 = arith.constant dense<0.000000e+00> : vector<2x32xf32>
    %89 = tpu.matmul %83, %88, %cst_56 {dimension_numbers = #tpu.dot_dimension_numbers<[1], [0], [0], [1], [0, 0, 1, 1], [], []>} : vector<2x32xf32>, vector<32x32xf32>, vector<2x32xf32> -> vector<2x32xf32>
    %90 = arith.addf %86, %89 : vector<2x32xf32>
    %c0_57 = arith.constant 0 : index
    %c0_58 = arith.constant 0 : index
    %91 = vector.load %arg5[%c0_57, %c0_58] : memref<1x32xf32, #tpu.memory_space<vmem>>, vector<1x32xf32>
    %92 = vector.broadcast %91 : vector<1x32xf32> to vector<2x32xf32>
    %93 = arith.addf %90, %92 : vector<2x32xf32>
    %94 = math.absf %93 : vector<2x32xf32>
    %cst_59 = arith.constant 0.000000e+00 : f32
    %95 = vector.broadcast %cst_59 : f32 to vector<2x32xf32>
    %96 = arith.subf %95, %94 : vector<2x32xf32>
    %97 = math.exp %96 : vector<2x32xf32>
    %cst_60 = arith.constant 1.000000e+00 : f32
    %98 = vector.broadcast %cst_60 : f32 to vector<2x32xf32>
    %99 = arith.addf %98, %97 : vector<2x32xf32>
    %100 = tpu.reciprocal %99 {approx = true} : vector<2x32xf32> -> vector<2x32xf32>
    %cst_61 = arith.constant 0.000000e+00 : f32
    %101 = vector.broadcast %cst_61 : f32 to vector<2x32xf32>
    %102 = arith.cmpf oge, %93, %101 : vector<2x32xf32>
    %103 = arith.mulf %97, %100 : vector<2x32xf32>
    %104 = arith.select %102, %100, %103 : vector<2x32xi1>, vector<2x32xf32>
    %105 = arith.mulf %104, %83 : vector<2x32xf32>
    %c0_62 = arith.constant 0 : index
    %c0_63 = arith.constant 0 : index
    %106 = vector.load %arg6[%c0_62, %c0_63] : memref<2x32xf32, #tpu.memory_space<vmem>>, vector<2x32xf32>
    tpu.vector_store %arg6[%c0_62, %c0_63], %105 {strides = array<i32>} : memref<2x32xf32, #tpu.memory_space<vmem>>, vector<2x32xf32>,
    return
  }
}

</mosaic_0001>

<llo_original>
// kernel: _lambda_.1
$region0: #{_lambda_.1}
  #allocation0 [shape = 'u32[]', space=smem, size = 0x4, offset = 0x4, fixed_abs, tag = 'smem constant byte address 0x4 - core index']
  #allocation1 [shape = 'u32[144,128]{1,0:T(1,128)}', space=vmem, size = 0x12000, scoped, tag = 'internal scratch']
  %s0 = inlined_call_operand.vmem [shape: f32[2,32], index: 0, kind: input, shape index: {}]
  %s1 = inlined_call_operand.vmem [shape: f32[4,32,16], index: 1, kind: input, shape index: {}]
  %s2 = inlined_call_operand.vmem [shape: f32[4,1,16], index: 2, kind: input, shape index: {}]
  %s3 = inlined_call_operand.vmem [shape: f32[4,16,32], index: 3, kind: input, shape index: {}]
  %s4 = inlined_call_operand.vmem [shape: f32[2,32,32], index: 4, kind: input, shape index: {}]
  %s5 = inlined_call_operand.vmem [shape: f32[1,32], index: 5, kind: input, shape index: {}]
  %s6 = inlined_call_operand.hbm [shape: f32[2,32], index: 6, kind: output, shape index: {}]
  %s7 = sld [smem:[#allocation0]]
  $region34: #{_lambda_.1} parent=0
    _
  %s9 = ssub.s32 1, %s7
  %s10 = scalar_select 0, %s9, %s7
  $region1: #{_lambda_.1} parent=0
    #allocation2 [shape = 'u8[1024]{0}', space=vmem, size = 0x400, scoped, tag = 'output window, operand 0, single buffered']
    #allocation3 [shape = 's32[1]{0}', space=sflag, size = 0x4, scoped, tag = 'scoped memory for _lambda_.1']
    %11 = vsyncpa [#allocation3], 0
    // Predicated region
    $region2: #{_lambda_.1} parent=1 // pred_check
      _
    $region3: #{_lambda_.1} parent=1 // pred_check_branch
      %13 = sbr.rel (0) target = $region5
    $region4: #{_lambda_.1} parent=1 // pred_region
      _
    $region5: #{_lambda_.1} parent=1 // pred_fallthru
      _
    // Predicated region
    $region6: #{_lambda_.1} parent=1 // pred_check
      _
    $region7: #{_lambda_.1} parent=1 // pred_check_branch
      %15 = sbr.rel (0) target = $region9
    $region8: #{_lambda_.1} parent=1 // pred_region
      _
    $region9: #{_lambda_.1} parent=1 // pred_fallthru
      _
    // Predicated region
    $region10: #{_lambda_.1} parent=1 // pred_check
      _
    $region11: #{_lambda_.1} parent=1 // pred_check_branch
      %17 = sbr.rel (0) target = $region13
    $region12: #{_lambda_.1} parent=1 // pred_region
      _
    $region13: #{_lambda_.1} parent=1 // pred_fallthru
      _
    // Predicated region
    $region14: #{_lambda_.1} parent=1 // pred_check
      _
    $region15: #{_lambda_.1} parent=1 // pred_check_branch
      %19 = sbr.rel (0) target = $region17
    $region16: #{_lambda_.1} parent=1 // pred_region
      _
    $region17: #{_lambda_.1} parent=1 // pred_fallthru
      _
    // Predicated region
    $region18: #{_lambda_.1} parent=1 // pred_check
      _
    $region19: #{_lambda_.1} parent=1 // pred_check_branch
      %21 = sbr.rel (0) target = $region21
    $region20: #{_lambda_.1} parent=1 // pred_region
      _
    $region21: #{_lambda_.1} parent=1 // pred_fallthru
      _
    // Predicated region
    $region22: #{_lambda_.1} parent=1 // pred_check
      _
    $region23: #{_lambda_.1} parent=1 // pred_check_branch
      %23 = sbr.rel (0) target = $region25
    $region24: #{_lambda_.1} parent=1 // pred_region
      _
    $region25: #{_lambda_.1} parent=1 // pred_fallthru
      _
    %v24 = vld [vmem:[%s0] sm:$0x3]
    %v25 = vld [vmem:[%s1] sm:$0xff]
    %v26 = vld [vmem:[%s1 + $0x8] sm:$0xff]
    %v27 = vld [vmem:[%s1 + $0x10] sm:$0xff]
    %v28 = vld [vmem:[%s1 + $0x18] sm:$0xff]
    %v29 = vld [vmem:[%s2] sm:$0x1]
    %v31 = vlaneseq
    %v32 = vshrl.u32 %v31, 7
    %v33 = vsub.s32 0, %v32
    %v34 = vrot.slane %v29, %v33
    %vm36 = vcmask 261120
    %v38 = vsel %vm36, %v24, 0
    %40 = vmatprep.subr.mxu0 0.0
    %41 = vmatpush1.msra.mxu0 %v25
    %42 = vmatprep.subr.mxu0 0.0
    %43 = vmatpush1.msra.mxu0 %v26
    %44 = vmatprep.subr.mxu0 0.0
    %45 = vmatpush1.msra.mxu0 %v27
    %46 = vmatprep.subr.mxu0 0.0
    %47 = vmatpush1.msra.mxu0 %v28
    %48 = vmatprep.subr.mxu0 0.0
    %49 = vmatpush1.msra.mxu0 0.0
    %50 = vmatprep.subr.mxu0 0.0
    %51 = vmatpush1.msra.mxu0 0.0
    %52 = vmatprep.subr.mxu0 0.0
    %53 = vmatpush1.msra.mxu0 0.0
    %54 = vmatprep.subr.mxu0 0.0
    %55 = vmatpush1.msra.mxu0 0.0
    %56 = vmatprep.subr.mxu0 0.0
    %57 = vmatpush1.msra.mxu0 0.0
    %58 = vmatprep.subr.mxu0 0.0
    %59 = vmatpush1.msra.mxu0 0.0
    %60 = vmatprep.subr.mxu0 0.0
    %61 = vmatpush1.msra.mxu0 0.0
    %62 = vmatprep.subr.mxu0 0.0
    %63 = vmatpush1.msra.mxu0 0.0
    %64 = vmatprep.subr.mxu0 0.0
    %65 = vmatpush1.msra.mxu0 0.0
    %66 = vmatprep.subr.mxu0 0.0
    %67 = vmatpush1.msra.mxu0 0.0
    %68 = vmatprep.subr.mxu0 0.0
    %69 = vmatpush1.msra.mxu0 0.0
    %70 = vmatprep.subr.mxu0 0.0
    %71 = vmatpush1.msra.mxu0 0.0
    %72 = vmatprep.subr.mxu0 0.0
    %73 = vmatpush1.msra.mxu0 0.0
    %74 = vmatprep.subr.mxu0 0.0
    %75 = vmatpush1.msra.mxu0 0.0
    %76 = vmatprep.subr.mxu0 0.0
    %77 = vmatpush1.msra.mxu0 0.0
    %78 = vmatprep.subr.mxu0 0.0
    %79 = vmatpush1.msra.mxu0 0.0
    %80 = vmatprep.subr.mxu0 0.0
    %81 = vmatpush1.msra.mxu0 0.0
    %82 = vmatprep.subr.mxu0 0.0
    %83 = vmatpush1.msra.mxu0 0.0
    %84 = vmatprep.subr.mxu0 0.0
    %85 = vmatpush1.msra.mxu0 0.0
    %86 = vmatprep.subr.mxu0 0.0
    %87 = vmatpush1.msra.mxu0 0.0
    %88 = vmatprep.subr.mxu0 0.0
    %89 = vmatpush1.msra.mxu0 0.0
    %90 = vmatprep.subr.mxu0 0.0
    %91 = vmatpush1.msra.mxu0 0.0
    %92 = vmatprep.subr.mxu0 0.0
    %93 = vmatpush1.msra.mxu0 0.0
    %94 = vmatprep.subr.mxu0 0.0
    %95 = vmatpush1.msra.mxu0 0.0
    %96 = vmatprep.subr.mxu0 0.0
    %97 = vmatpush1.msra.mxu0 0.0
    %98 = vmatprep.subr.mxu0 0.0
    %99 = vmatpush1.msra.mxu0 0.0
    %100 = vmatprep.subr.mxu0 0.0
    %101 = vmatpush1.msra.mxu0 0.0
    %102 = vmatprep.subr.mxu0 0.0
    %103 = vmatpush1.msra.mxu0 0.0
    %104 = vmatprep.mubr.f32.mxu0 0.0
    %105 = vmatmul.mubr.f32.gmra.mrb[0].mxu0 %v38
    %v106 = vpop.f32.mrb[0].mxu0
    %v107 = vadd.f32 %v34, %v106
    %v108 = vpop.f32.mrb[0].mxu0
    %109 = vdwg.mxu0
    %vm110 = vcmask 123904
    %v111 = vsel %vm110, %v107, -inf
    %112 = vmax.xlane.f32.xlu0 %v111
    %v113 = vpop.xlane.xlu0 %112
    %v114 = vsub.f32 %v107, %v113
    %v115 = vmul.f32 %v114, 1.442695
    %v116 = vpow.pop %v115
    %v117 = vsel %vm110, %v116, 0.0
    %118 = vadd.xlane.f32.xlu0 %v117
    %v119 = vpop.xlane.xlu0 %118
    %v120 = vrcp.pop %v119
    %v121 = vmul.f32 %v116, %v120
    %v122 = vld [vmem:[%s3] sm:$0xff]
    %v123 = vld [vmem:[%s3 + $0x8] sm:$0xff]
    %s124 = scalar_lea.vmem %s1, 32
    %v125 = vld [vmem:[%s124] sm:$0xff]
    %v126 = vld [vmem:[%s124 + $0x8] sm:$0xff]
    %v127 = vld [vmem:[%s124 + $0x10] sm:$0xff]
    %v128 = vld [vmem:[%s124 + $0x18] sm:$0xff]
    %s129 = scalar_lea.vmem %s2, 1
    %v130 = vld [vmem:[%s129] sm:$0x1]
    %v132 = vlaneseq
    %v133 = vshrl.u32 %v132, 7
    %v134 = vsub.s32 0, %v133
    %v135 = vrot.slane %v130, %v134
    %137 = vmatprep.subr.mxu0 0.0
    %138 = vmatpush1.msra.mxu0 %v125
    %139 = vmatprep.subr.mxu0 0.0
    %140 = vmatpush1.msra.mxu0 %v126
    %141 = vmatprep.subr.mxu0 0.0
    %142 = vmatpush1.msra.mxu0 %v127
    %143 = vmatprep.subr.mxu0 0.0
    %144 = vmatpush1.msra.mxu0 %v128
    %145 = vmatprep.subr.mxu0 0.0
    %146 = vmatpush1.msra.mxu0 0.0
    %147 = vmatprep.subr.mxu0 0.0
    %148 = vmatpush1.msra.mxu0 0.0
    %149 = vmatprep.subr.mxu0 0.0
    %150 = vmatpush1.msra.mxu0 0.0
    %151 = vmatprep.subr.mxu0 0.0
    %152 = vmatpush1.msra.mxu0 0.0
    %153 = vmatprep.subr.mxu0 0.0
    %154 = vmatpush1.msra.mxu0 0.0
    %155 = vmatprep.subr.mxu0 0.0
    %156 = vmatpush1.msra.mxu0 0.0
    %157 = vmatprep.subr.mxu0 0.0
    %158 = vmatpush1.msra.mxu0 0.0
    %159 = vmatprep.subr.mxu0 0.0
    %160 = vmatpush1.msra.mxu0 0.0
    %161 = vmatprep.subr.mxu0 0.0
    %162 = vmatpush1.msra.mxu0 0.0
    %163 = vmatprep.subr.mxu0 0.0
    %164 = vmatpush1.msra.mxu0 0.0
    %165 = vmatprep.subr.mxu0 0.0
    %166 = vmatpush1.msra.mxu0 0.0
    %167 = vmatprep.subr.mxu0 0.0
    %168 = vmatpush1.msra.mxu0 0.0
    %169 = vmatprep.subr.mxu0 0.0
    %170 = vmatpush1.msra.mxu0 0.0
    %171 = vmatprep.subr.mxu0 0.0
    %172 = vmatpush1.msra.mxu0 0.0
    %173 = vmatprep.subr.mxu0 0.0
    %174 = vmatpush1.msra.mxu0 0.0
    %175 = vmatprep.subr.mxu0 0.0
    %176 = vmatpush1.msra.mxu0 0.0
    %177 = vmatprep.subr.mxu0 0.0
    %178 = vmatpush1.msra.mxu0 0.0
    %179 = vmatprep.subr.mxu0 0.0
    %180 = vmatpush1.msra.mxu0 0.0
    %181 = vmatprep.subr.mxu0 0.0
    %182 = vmatpush1.msra.mxu0 0.0
    %183 = vmatprep.subr.mxu0 0.0
    %184 = vmatpush1.msra.mxu0 0.0
    %185 = vmatprep.subr.mxu0 0.0
    %186 = vmatpush1.msra.mxu0 0.0
    %187 = vmatprep.subr.mxu0 0.0
    %188 = vmatpush1.msra.mxu0 0.0
    %189 = vmatprep.subr.mxu0 0.0
    %190 = vmatpush1.msra.mxu0 0.0
    %191 = vmatprep.subr.mxu0 0.0
    %192 = vmatpush1.msra.mxu0 0.0
    %193 = vmatprep.subr.mxu0 0.0
    %194 = vmatpush1.msra.mxu0 0.0
    %195 = vmatprep.subr.mxu0 0.0
    %196 = vmatpush1.msra.mxu0 0.0
    %197 = vmatprep.subr.mxu0 0.0
    %198 = vmatpush1.msra.mxu0 0.0
    %199 = vmatprep.subr.mxu0 0.0
    %200 = vmatpush1.msra.mxu0 0.0
    %201 = vmatprep.mubr.f32.mxu0 0.0
    %202 = vmatmul.mubr.f32.gmra.mrb[0].mxu0 %v38
    %v203 = vpop.f32.mrb[0].mxu0
    %v204 = vadd.f32 %v135, %v203
    %v205 = vpop.f32.mrb[0].mxu0
    %206 = vdwg.mxu0
    %v207 = vsel %vm110, %v204, -inf
    %208 = vmax.xlane.f32.xlu0 %v207
    %v209 = vpop.xlane.xlu0 %208
    %v210 = vsub.f32 %v204, %v209
    %v211 = vmul.f32 %v210, 1.442695
    %v212 = vpow.pop %v211
    %v213 = vsel %vm110, %v212, 0.0
    %214 = vadd.xlane.f32.xlu0 %v213
    %v215 = vpop.xlane.xlu0 %214
    %v216 = vrcp.pop %v215
    %v217 = vmul.f32 %v212, %v216
    %s218 = scalar_lea.vmem %s3, 16
    %v219 = vld [vmem:[%s218] sm:$0xff]
    %v220 = vld [vmem:[%s218 + $0x8] sm:$0xff]
    %vm221 = vcmask 130048
    %v223 = vsel %vm221, %v217, 0
    %225 = vmatprep.subr.mxu0 0.0
    %226 = vmatpush1.msra.mxu0 %v219
    %227 = vmatprep.subr.mxu0 0.0
    %228 = vmatpush1.msra.mxu0 %v220
    %229 = vmatprep.subr.mxu0 0.0
    %230 = vmatpush1.msra.mxu0 0.0
    %231 = vmatprep.subr.mxu0 0.0
    %232 = vmatpush1.msra.mxu0 0.0
    %233 = vmatprep.subr.mxu0 0.0
    %234 = vmatpush1.msra.mxu0 0.0
    %235 = vmatprep.subr.mxu0 0.0
    %236 = vmatpush1.msra.mxu0 0.0
    %237 = vmatprep.subr.mxu0 0.0
    %238 = vmatpush1.msra.mxu0 0.0
    %239 = vmatprep.subr.mxu0 0.0
    %240 = vmatpush1.msra.mxu0 0.0
    %241 = vmatprep.subr.mxu0 0.0
    %242 = vmatpush1.msra.mxu0 0.0
    %243 = vmatprep.subr.mxu0 0.0
    %244 = vmatpush1.msra.mxu0 0.0
    %245 = vmatprep.subr.mxu0 0.0
    %246 = vmatpush1.msra.mxu0 0.0
    %247 = vmatprep.subr.mxu0 0.0
    %248 = vmatpush1.msra.mxu0 0.0
    %249 = vmatprep.subr.mxu0 0.0
    %250 = vmatpush1.msra.mxu0 0.0
    %251 = vmatprep.subr.mxu0 0.0
    %252 = vmatpush1.msra.mxu0 0.0
    %253 = vmatprep.subr.mxu0 0.0
    %254 = vmatpush1.msra.mxu0 0.0
    %255 = vmatprep.subr.mxu0 0.0
    %256 = vmatpush1.msra.mxu0 0.0
    %257 = vmatprep.subr.mxu0 0.0
    %258 = vmatpush1.msra.mxu0 0.0
    %259 = vmatprep.subr.mxu0 0.0
    %260 = vmatpush1.msra.mxu0 0.0
    %261 = vmatprep.subr.mxu0 0.0
    %262 = vmatpush1.msra.mxu0 0.0
    %263 = vmatprep.subr.mxu0 0.0
    %264 = vmatpush1.msra.mxu0 0.0
    %265 = vmatprep.subr.mxu0 0.0
    %266 = vmatpush1.msra.mxu0 0.0
    %267 = vmatprep.subr.mxu0 0.0
    %268 = vmatpush1.msra.mxu0 0.0
    %269 = vmatprep.subr.mxu0 0.0
    %270 = vmatpush1.msra.mxu0 0.0
    %271 = vmatprep.subr.mxu0 0.0
    %272 = vmatpush1.msra.mxu0 0.0
    %273 = vmatprep.subr.mxu0 0.0
    %274 = vmatpush1.msra.mxu0 0.0
    %275 = vmatprep.subr.mxu0 0.0
    %276 = vmatpush1.msra.mxu0 0.0
    %277 = vmatprep.subr.mxu0 0.0
    %278 = vmatpush1.msra.mxu0 0.0
    %279 = vmatprep.subr.mxu0 0.0
    %280 = vmatpush1.msra.mxu0 0.0
    %281 = vmatprep.subr.mxu0 0.0
    %282 = vmatpush1.msra.mxu0 0.0
    %283 = vmatprep.subr.mxu0 0.0
    %284 = vmatpush1.msra.mxu0 0.0
    %285 = vmatprep.subr.mxu0 0.0
    %286 = vmatpush1.msra.mxu0 0.0
    %287 = vmatprep.subr.mxu0 0.0
    %288 = vmatpush1.msra.mxu0 0.0
    %289 = vmatprep.mubr.f32.mxu0 0.0
    %290 = vmatmul.mubr.f32.gmra.mrb[0].mxu0 %v223
    %v291 = vpop.f32.mrb[0].mxu0
    %v292 = vadd.f32 0.0, %v291
    %v293 = vpop.f32.mrb[0].mxu0
    %294 = vdwg.mxu0
    %v296 = vsel %vm221, %v121, 0
    %298 = vmatprep.subr.mxu0 0.0
    %299 = vmatpush1.msra.mxu0 %v122
    %300 = vmatprep.subr.mxu0 0.0
    %301 = vmatpush1.msra.mxu0 %v123
    %302 = vmatprep.subr.mxu0 0.0
    %303 = vmatpush1.msra.mxu0 0.0
    %304 = vmatprep.subr.mxu0 0.0
    %305 = vmatpush1.msra.mxu0 0.0
    %306 = vmatprep.subr.mxu0 0.0
    %307 = vmatpush1.msra.mxu0 0.0
    %308 = vmatprep.subr.mxu0 0.0
    %309 = vmatpush1.msra.mxu0 0.0
    %310 = vmatprep.subr.mxu0 0.0
    %311 = vmatpush1.msra.mxu0 0.0
    %312 = vmatprep.subr.mxu0 0.0
    %313 = vmatpush1.msra.mxu0 0.0
    %314 = vmatprep.subr.mxu0 0.0
    %315 = vmatpush1.msra.mxu0 0.0
    %316 = vmatprep.subr.mxu0 0.0
    %317 = vmatpush1.msra.mxu0 0.0
    %318 = vmatprep.subr.mxu0 0.0
    %319 = vmatpush1.msra.mxu0 0.0
    %320 = vmatprep.subr.mxu0 0.0
    %321 = vmatpush1.msra.mxu0 0.0
    %322 = vmatprep.subr.mxu0 0.0
    %323 = vmatpush1.msra.mxu0 0.0
    %324 = vmatprep.subr.mxu0 0.0
    %325 = vmatpush1.msra.mxu0 0.0
    %326 = vmatprep.subr.mxu0 0.0
    %327 = vmatpush1.msra.mxu0 0.0
    %328 = vmatprep.subr.mxu0 0.0
    %329 = vmatpush1.msra.mxu0 0.0
    %330 = vmatprep.subr.mxu0 0.0
    %331 = vmatpush1.msra.mxu0 0.0
    %332 = vmatprep.subr.mxu0 0.0
    %333 = vmatpush1.msra.mxu0 0.0
    %334 = vmatprep.subr.mxu0 0.0
    %335 = vmatpush1.msra.mxu0 0.0
    %336 = vmatprep.subr.mxu0 0.0
    %337 = vmatpush1.msra.mxu0 0.0
    %338 = vmatprep.subr.mxu0 0.0
    %339 = vmatpush1.msra.mxu0 0.0
    %340 = vmatprep.subr.mxu0 0.0
    %341 = vmatpush1.msra.mxu0 0.0
    %342 = vmatprep.subr.mxu0 0.0
    %343 = vmatpush1.msra.mxu0 0.0
    %344 = vmatprep.subr.mxu0 0.0
    %345 = vmatpush1.msra.mxu0 0.0
    %346 = vmatprep.subr.mxu0 0.0
    %347 = vmatpush1.msra.mxu0 0.0
    %348 = vmatprep.subr.mxu0 0.0
    %349 = vmatpush1.msra.mxu0 0.0
    %350 = vmatprep.subr.mxu0 0.0
    %351 = vmatpush1.msra.mxu0 0.0
    %352 = vmatprep.subr.mxu0 0.0
    %353 = vmatpush1.msra.mxu0 0.0
    %354 = vmatprep.subr.mxu0 0.0
    %355 = vmatpush1.msra.mxu0 0.0
    %356 = vmatprep.subr.mxu0 0.0
    %357 = vmatpush1.msra.mxu0 0.0
    %358 = vmatprep.subr.mxu0 0.0
    %359 = vmatpush1.msra.mxu0 0.0
    %360 = vmatprep.subr.mxu0 0.0
    %361 = vmatpush1.msra.mxu0 0.0
    %362 = vmatprep.mubr.f32.mxu0 0.0
    %363 = vmatmul.mubr.f32.gmra.mrb[0].mxu0 %v296
    %v364 = vpop.f32.mrb[0].mxu0
    %v365 = vadd.f32 %v292, %v364
    %v366 = vpop.f32.mrb[0].mxu0
    %367 = vdwg.mxu0
    %s368 = scalar_lea.vmem %s1, 64
    %v369 = vld [vmem:[%s368] sm:$0xff]
    %v370 = vld [vmem:[%s368 + $0x8] sm:$0xff]
    %v371 = vld [vmem:[%s368 + $0x10] sm:$0xff]
    %v372 = vld [vmem:[%s368 + $0x18] sm:$0xff]
    %s373 = scalar_lea.vmem %s2, 2
    %v374 = vld [vmem:[%s373] sm:$0x1]
    %v376 = vlaneseq
    %v377 = vshrl.u32 %v376, 7
    %v378 = vsub.s32 0, %v377
    %v379 = vrot.slane %v374, %v378
    %381 = vmatprep.subr.mxu0 0.0
    %382 = vmatpush1.msra.mxu0 %v369
    %383 = vmatprep.subr.mxu0 0.0
    %384 = vmatpush1.msra.mxu0 %v370
    %385 = vmatprep.subr.mxu0 0.0
    %386 = vmatpush1.msra.mxu0 %v371
    %387 = vmatprep.subr.mxu0 0.0
    %388 = vmatpush1.msra.mxu0 %v372
    %389 = vmatprep.subr.mxu0 0.0
    %390 = vmatpush1.msra.mxu0 0.0
    %391 = vmatprep.subr.mxu0 0.0
    %392 = vmatpush1.msra.mxu0 0.0
    %393 = vmatprep.subr.mxu0 0.0
    %394 = vmatpush1.msra.mxu0 0.0
    %395 = vmatprep.subr.mxu0 0.0
    %396 = vmatpush1.msra.mxu0 0.0
    %397 = vmatprep.subr.mxu0 0.0
    %398 = vmatpush1.msra.mxu0 0.0
    %399 = vmatprep.subr.mxu0 0.0
    %400 = vmatpush1.msra.mxu0 0.0
    %401 = vmatprep.subr.mxu0 0.0
    %402 = vmatpush1.msra.mxu0 0.0
    %403 = vmatprep.subr.mxu0 0.0
    %404 = vmatpush1.msra.mxu0 0.0
    %405 = vmatprep.subr.mxu0 0.0
    %406 = vmatpush1.msra.mxu0 0.0
    %407 = vmatprep.subr.mxu0 0.0
    %408 = vmatpush1.msra.mxu0 0.0
    %409 = vmatprep.subr.mxu0 0.0
    %410 = vmatpush1.msra.mxu0 0.0
    %411 = vmatprep.subr.mxu0 0.0
    %412 = vmatpush1.msra.mxu0 0.0
    %413 = vmatprep.subr.mxu0 0.0
    %414 = vmatpush1.msra.mxu0 0.0
    %415 = vmatprep.subr.mxu0 0.0
    %416 = vmatpush1.msra.mxu0 0.0
    %417 = vmatprep.subr.mxu0 0.0
    %418 = vmatpush1.msra.mxu0 0.0
    %419 = vmatprep.subr.mxu0 0.0
    %420 = vmatpush1.msra.mxu0 0.0
    %421 = vmatprep.subr.mxu0 0.0
    %422 = vmatpush1.msra.mxu0 0.0
    %423 = vmatprep.subr.mxu0 0.0
    %424 = vmatpush1.msra.mxu0 0.0
    %425 = vmatprep.subr.mxu0 0.0
    %426 = vmatpush1.msra.mxu0 0.0
    %427 = vmatprep.subr.mxu0 0.0
    %428 = vmatpush1.msra.mxu0 0.0
    %429 = vmatprep.subr.mxu0 0.0
    %430 = vmatpush1.msra.mxu0 0.0
    %431 = vmatprep.subr.mxu0 0.0
    %432 = vmatpush1.msra.mxu0 0.0
    %433 = vmatprep.subr.mxu0 0.0
    %434 = vmatpush1.msra.mxu0 0.0
    %435 = vmatprep.subr.mxu0 0.0
    %436 = vmatpush1.msra.mxu0 0.0
    %437 = vmatprep.subr.mxu0 0.0
    %438 = vmatpush1.msra.mxu0 0.0
    %439 = vmatprep.subr.mxu0 0.0
    %440 = vmatpush1.msra.mxu0 0.0
    %441 = vmatprep.subr.mxu0 0.0
    %442 = vmatpush1.msra.mxu0 0.0
    %443 = vmatprep.subr.mxu0 0.0
    %444 = vmatpush1.msra.mxu0 0.0
    %445 = vmatprep.mubr.f32.mxu0 0.0
    %446 = vmatmul.mubr.f32.gmra.mrb[0].mxu0 %v38
    %v447 = vpop.f32.mrb[0].mxu0
    %v448 = vadd.f32 %v379, %v447
    %v449 = vpop.f32.mrb[0].mxu0
    %450 = vdwg.mxu0
    %v451 = vsel %vm110, %v448, -inf
    %452 = vmax.xlane.f32.xlu0 %v451
    %v453 = vpop.xlane.xlu0 %452
    %v454 = vsub.f32 %v448, %v453
    %v455 = vmul.f32 %v454, 1.442695
    %v456 = vpow.pop %v455
    %v457 = vsel %vm110, %v456, 0.0
    %458 = vadd.xlane.f32.xlu0 %v457
    %v459 = vpop.xlane.xlu0 %458
    %v460 = vrcp.pop %v459
    %v461 = vmul.f32 %v456, %v460
    %s462 = scalar_lea.vmem %s3, 32
    %v463 = vld [vmem:[%s462] sm:$0xff]
    %v464 = vld [vmem:[%s462 + $0x8] sm:$0xff]
    %v466 = vsel %vm221, %v461, 0
    %468 = vmatprep.subr.mxu0 0.0
    %469 = vmatpush1.msra.mxu0 %v463
    %470 = vmatprep.subr.mxu0 0.0
    %471 = vmatpush1.msra.mxu0 %v464
    %472 = vmatprep.subr.mxu0 0.0
    %473 = vmatpush1.msra.mxu0 0.0
    %474 = vmatprep.subr.mxu0 0.0
    %475 = vmatpush1.msra.mxu0 0.0
    %476 = vmatprep.subr.mxu0 0.0
    %477 = vmatpush1.msra.mxu0 0.0
    %478 = vmatprep.subr.mxu0 0.0
    %479 = vmatpush1.msra.mxu0 0.0
    %480 = vmatprep.subr.mxu0 0.0
    %481 = vmatpush1.msra.mxu0 0.0
    %482 = vmatprep.subr.mxu0 0.0
    %483 = vmatpush1.msra.mxu0 0.0
    %484 = vmatprep.subr.mxu0 0.0
    %485 = vmatpush1.msra.mxu0 0.0
    %486 = vmatprep.subr.mxu0 0.0
    %487 = vmatpush1.msra.mxu0 0.0
    %488 = vmatprep.subr.mxu0 0.0
    %489 = vmatpush1.msra.mxu0 0.0
    %490 = vmatprep.subr.mxu0 0.0
    %491 = vmatpush1.msra.mxu0 0.0
    %492 = vmatprep.subr.mxu0 0.0
    %493 = vmatpush1.msra.mxu0 0.0
    %494 = vmatprep.subr.mxu0 0.0
    %495 = vmatpush1.msra.mxu0 0.0
    %496 = vmatprep.subr.mxu0 0.0
    %497 = vmatpush1.msra.mxu0 0.0
    %498 = vmatprep.subr.mxu0 0.0
    %499 = vmatpush1.msra.mxu0 0.0
    %500 = vmatprep.subr.mxu0 0.0
    %501 = vmatpush1.msra.mxu0 0.0
    %502 = vmatprep.subr.mxu0 0.0
    %503 = vmatpush1.msra.mxu0 0.0
    %504 = vmatprep.subr.mxu0 0.0
    %505 = vmatpush1.msra.mxu0 0.0
    %506 = vmatprep.subr.mxu0 0.0
    %507 = vmatpush1.msra.mxu0 0.0
    %508 = vmatprep.subr.mxu0 0.0
    %509 = vmatpush1.msra.mxu0 0.0
    %510 = vmatprep.subr.mxu0 0.0
    %511 = vmatpush1.msra.mxu0 0.0
    %512 = vmatprep.subr.mxu0 0.0
    %513 = vmatpush1.msra.mxu0 0.0
    %514 = vmatprep.subr.mxu0 0.0
    %515 = vmatpush1.msra.mxu0 0.0
    %516 = vmatprep.subr.mxu0 0.0
    %517 = vmatpush1.msra.mxu0 0.0
    %518 = vmatprep.subr.mxu0 0.0
    %519 = vmatpush1.msra.mxu0 0.0
    %520 = vmatprep.subr.mxu0 0.0
    %521 = vmatpush1.msra.mxu0 0.0
    %522 = vmatprep.subr.mxu0 0.0
    %523 = vmatpush1.msra.mxu0 0.0
    %524 = vmatprep.subr.mxu0 0.0
    %525 = vmatpush1.msra.mxu0 0.0
    %526 = vmatprep.subr.mxu0 0.0
    %527 = vmatpush1.msra.mxu0 0.0
    %528 = vmatprep.subr.mxu0 0.0
    %529 = vmatpush1.msra.mxu0 0.0
    %530 = vmatprep.subr.mxu0 0.0
    %531 = vmatpush1.msra.mxu0 0.0
    %532 = vmatprep.mubr.f32.mxu0 0.0
    %533 = vmatmul.mubr.f32.gmra.mrb[0].mxu0 %v466
    %v534 = vpop.f32.mrb[0].mxu0
    %v535 = vadd.f32 0.0, %v534
    %v536 = vpop.f32.mrb[0].mxu0
    %537 = vdwg.mxu0
    %v538 = vadd.f32 %v365, %v535
    %s539 = scalar_lea.vmem %s1, 96
    %v540 = vld [vmem:[%s539] sm:$0xff]
    %v541 = vld [vmem:[%s539 + $0x8] sm:$0xff]
    %v542 = vld [vmem:[%s539 + $0x10] sm:$0xff]
    %v543 = vld [vmem:[%s539 + $0x18] sm:$0xff]
    %s544 = scalar_lea.vmem %s2, 3
    %v545 = vld [vmem:[%s544] sm:$0x1]
    %v547 = vlaneseq
    %v548 = vshrl.u32 %v547, 7
    %v549 = vsub.s32 0, %v548
    %v550 = vrot.slane %v545, %v549
    %552 = vmatprep.subr.mxu0 0.0
    %553 = vmatpush1.msra.mxu0 %v540
    %554 = vmatprep.subr.mxu0 0.0
    %555 = vmatpush1.msra.mxu0 %v541
    %556 = vmatprep.subr.mxu0 0.0
    %557 = vmatpush1.msra.mxu0 %v542
    %558 = vmatprep.subr.mxu0 0.0
    %559 = vmatpush1.msra.mxu0 %v543
    %560 = vmatprep.subr.mxu0 0.0
    %561 = vmatpush1.msra.mxu0 0.0
    %562 = vmatprep.subr.mxu0 0.0
    %563 = vmatpush1.msra.mxu0 0.0
    %564 = vmatprep.subr.mxu0 0.0
    %565 = vmatpush1.msra.mxu0 0.0
    %566 = vmatprep.subr.mxu0 0.0
    %567 = vmatpush1.msra.mxu0 0.0
    %568 = vmatprep.subr.mxu0 0.0
    %569 = vmatpush1.msra.mxu0 0.0
    %570 = vmatprep.subr.mxu0 0.0
    %571 = vmatpush1.msra.mxu0 0.0
    %572 = vmatprep.subr.mxu0 0.0
    %573 = vmatpush1.msra.mxu0 0.0
    %574 = vmatprep.subr.mxu0 0.0
    %575 = vmatpush1.msra.mxu0 0.0
    %576 = vmatprep.subr.mxu0 0.0
    %577 = vmatpush1.msra.mxu0 0.0
    %578 = vmatprep.subr.mxu0 0.0
    %579 = vmatpush1.msra.mxu0 0.0
    %580 = vmatprep.subr.mxu0 0.0
    %581 = vmatpush1.msra.mxu0 0.0
    %582 = vmatprep.subr.mxu0 0.0
    %583 = vmatpush1.msra.mxu0 0.0
    %584 = vmatprep.subr.mxu0 0.0
    %585 = vmatpush1.msra.mxu0 0.0
    %586 = vmatprep.subr.mxu0 0.0
    %587 = vmatpush1.msra.mxu0 0.0
    %588 = vmatprep.subr.mxu0 0.0
    %589 = vmatpush1.msra.mxu0 0.0
    %590 = vmatprep.subr.mxu0 0.0
    %591 = vmatpush1.msra.mxu0 0.0
    %592 = vmatprep.subr.mxu0 0.0
    %593 = vmatpush1.msra.mxu0 0.0
    %594 = vmatprep.subr.mxu0 0.0
    %595 = vmatpush1.msra.mxu0 0.0
    %596 = vmatprep.subr.mxu0 0.0
    %597 = vmatpush1.msra.mxu0 0.0
    %598 = vmatprep.subr.mxu0 0.0
    %599 = vmatpush1.msra.mxu0 0.0
    %600 = vmatprep.subr.mxu0 0.0
    %601 = vmatpush1.msra.mxu0 0.0
    %602 = vmatprep.subr.mxu0 0.0
    %603 = vmatpush1.msra.mxu0 0.0
    %604 = vmatprep.subr.mxu0 0.0
    %605 = vmatpush1.msra.mxu0 0.0
    %606 = vmatprep.subr.mxu0 0.0
    %607 = vmatpush1.msra.mxu0 0.0
    %608 = vmatprep.subr.mxu0 0.0
    %609 = vmatpush1.msra.mxu0 0.0
    %610 = vmatprep.subr.mxu0 0.0
    %611 = vmatpush1.msra.mxu0 0.0
    %612 = vmatprep.subr.mxu0 0.0
    %613 = vmatpush1.msra.mxu0 0.0
    %614 = vmatprep.subr.mxu0 0.0
    %615 = vmatpush1.msra.mxu0 0.0
    %616 = vmatprep.mubr.f32.mxu0 0.0
    %617 = vmatmul.mubr.f32.gmra.mrb[0].mxu0 %v38
    %v618 = vpop.f32.mrb[0].mxu0
    %v619 = vadd.f32 %v550, %v618
    %v620 = vpop.f32.mrb[0].mxu0
    %621 = vdwg.mxu0
    %v622 = vsel %vm110, %v619, -inf
    %623 = vmax.xlane.f32.xlu0 %v622
    %v624 = vpop.xlane.xlu0 %623
    %v625 = vsub.f32 %v619, %v624
    %v626 = vmul.f32 %v625, 1.442695
    %v627 = vpow.pop %v626
    %v628 = vsel %vm110, %v627, 0.0
    %629 = vadd.xlane.f32.xlu0 %v628
    %v630 = vpop.xlane.xlu0 %629
    %v631 = vrcp.pop %v630
    %v632 = vmul.f32 %v627, %v631
    %s633 = scalar_lea.vmem %s3, 48
    %v634 = vld [vmem:[%s633] sm:$0xff]
    %v635 = vld [vmem:[%s633 + $0x8] sm:$0xff]
    %v637 = vsel %vm221, %v632, 0
    %639 = vmatprep.subr.mxu0 0.0
    %640 = vmatpush1.msra.mxu0 %v634
    %641 = vmatprep.subr.mxu0 0.0
    %642 = vmatpush1.msra.mxu0 %v635
    %643 = vmatprep.subr.mxu0 0.0
    %644 = vmatpush1.msra.mxu0 0.0
    %645 = vmatprep.subr.mxu0 0.0
    %646 = vmatpush1.msra.mxu0 0.0
    %647 = vmatprep.subr.mxu0 0.0
    %648 = vmatpush1.msra.mxu0 0.0
    %649 = vmatprep.subr.mxu0 0.0
    %650 = vmatpush1.msra.mxu0 0.0
    %651 = vmatprep.subr.mxu0 0.0
    %652 = vmatpush1.msra.mxu0 0.0
    %653 = vmatprep.subr.mxu0 0.0
    %654 = vmatpush1.msra.mxu0 0.0
    %655 = vmatprep.subr.mxu0 0.0
    %656 = vmatpush1.msra.mxu0 0.0
    %657 = vmatprep.subr.mxu0 0.0
    %658 = vmatpush1.msra.mxu0 0.0
    %659 = vmatprep.subr.mxu0 0.0
    %660 = vmatpush1.msra.mxu0 0.0
    %661 = vmatprep.subr.mxu0 0.0
    %662 = vmatpush1.msra.mxu0 0.0
    %663 = vmatprep.subr.mxu0 0.0
    %664 = vmatpush1.msra.mxu0 0.0
    %665 = vmatprep.subr.mxu0 0.0
    %666 = vmatpush1.msra.mxu0 0.0
    %667 = vmatprep.subr.mxu0 0.0
    %668 = vmatpush1.msra.mxu0 0.0
    %669 = vmatprep.subr.mxu0 0.0
    %670 = vmatpush1.msra.mxu0 0.0
    %671 = vmatprep.subr.mxu0 0.0
    %672 = vmatpush1.msra.mxu0 0.0
    %673 = vmatprep.subr.mxu0 0.0
    %674 = vmatpush1.msra.mxu0 0.0
    %675 = vmatprep.subr.mxu0 0.0
    %676 = vmatpush1.msra.mxu0 0.0
    %677 = vmatprep.subr.mxu0 0.0
    %678 = vmatpush1.msra.mxu0 0.0
    %679 = vmatprep.subr.mxu0 0.0
    %680 = vmatpush1.msra.mxu0 0.0
    %681 = vmatprep.subr.mxu0 0.0
    %682 = vmatpush1.msra.mxu0 0.0
    %683 = vmatprep.subr.mxu0 0.0
    %684 = vmatpush1.msra.mxu0 0.0
    %685 = vmatprep.subr.mxu0 0.0
    %686 = vmatpush1.msra.mxu0 0.0
    %687 = vmatprep.subr.mxu0 0.0
    %688 = vmatpush1.msra.mxu0 0.0
    %689 = vmatprep.subr.mxu0 0.0
    %690 = vmatpush1.msra.mxu0 0.0
    %691 = vmatprep.subr.mxu0 0.0
    %692 = vmatpush1.msra.mxu0 0.0
    %693 = vmatprep.subr.mxu0 0.0
    %694 = vmatpush1.msra.mxu0 0.0
    %695 = vmatprep.subr.mxu0 0.0
    %696 = vmatpush1.msra.mxu0 0.0
    %697 = vmatprep.subr.mxu0 0.0
    %698 = vmatpush1.msra.mxu0 0.0
    %699 = vmatprep.subr.mxu0 0.0
    %700 = vmatpush1.msra.mxu0 0.0
    %701 = vmatprep.subr.mxu0 0.0
    %702 = vmatpush1.msra.mxu0 0.0
    %703 = vmatprep.mubr.f32.mxu0 0.0
    %704 = vmatmul.mubr.f32.gmra.mrb[0].mxu0 %v637
    %v705 = vpop.f32.mrb[0].mxu0
    %v706 = vadd.f32 0.0, %v705
    %v707 = vpop.f32.mrb[0].mxu0
    %708 = vdwg.mxu0
    %v709 = vadd.f32 %v538, %v706
    %v710 = vld [vmem:[%s4] sm:$0xff]
    %v711 = vld [vmem:[%s4 + $0x8] sm:$0xff]
    %v712 = vld [vmem:[%s4 + $0x10] sm:$0xff]
    %v713 = vld [vmem:[%s4 + $0x18] sm:$0xff]
    %s714 = scalar_lea.vmem %s4, 32
    %v715 = vld [vmem:[%s714] sm:$0xff]
    %v716 = vld [vmem:[%s714 + $0x8] sm:$0xff]
    %v717 = vld [vmem:[%s714 + $0x10] sm:$0xff]
    %v718 = vld [vmem:[%s714 + $0x18] sm:$0xff]
    %v720 = vsel %vm36, %v709, 0
    %722 = vmatprep.subr.mxu0 0.0
    %723 = vmatpush1.msra.mxu0 %v715
    %724 = vmatprep.subr.mxu0 0.0
    %725 = vmatpush1.msra.mxu0 %v716
    %726 = vmatprep.subr.mxu0 0.0
    %727 = vmatpush1.msra.mxu0 %v717
    %728 = vmatprep.subr.mxu0 0.0
    %729 = vmatpush1.msra.mxu0 %v718
    %730 = vmatprep.subr.mxu0 0.0
    %731 = vmatpush1.msra.mxu0 0.0
    %732 = vmatprep.subr.mxu0 0.0
    %733 = vmatpush1.msra.mxu0 0.0
    %734 = vmatprep.subr.mxu0 0.0
    %735 = vmatpush1.msra.mxu0 0.0
    %736 = vmatprep.subr.mxu0 0.0
    %737 = vmatpush1.msra.mxu0 0.0
    %738 = vmatprep.subr.mxu0 0.0
    %739 = vmatpush1.msra.mxu0 0.0
    %740 = vmatprep.subr.mxu0 0.0
    %741 = vmatpush1.msra.mxu0 0.0
    %742 = vmatprep.subr.mxu0 0.0
    %743 = vmatpush1.msra.mxu0 0.0
    %744 = vmatprep.subr.mxu0 0.0
    %745 = vmatpush1.msra.mxu0 0.0
    %746 = vmatprep.subr.mxu0 0.0
    %747 = vmatpush1.msra.mxu0 0.0
    %748 = vmatprep.subr.mxu0 0.0
    %749 = vmatpush1.msra.mxu0 0.0
    %750 = vmatprep.subr.mxu0 0.0
    %751 = vmatpush1.msra.mxu0 0.0
    %752 = vmatprep.subr.mxu0 0.0
    %753 = vmatpush1.msra.mxu0 0.0
    %754 = vmatprep.subr.mxu0 0.0
    %755 = vmatpush1.msra.mxu0 0.0
    %756 = vmatprep.subr.mxu0 0.0
    %757 = vmatpush1.msra.mxu0 0.0
    %758 = vmatprep.subr.mxu0 0.0
    %759 = vmatpush1.msra.mxu0 0.0
    %760 = vmatprep.subr.mxu0 0.0
    %761 = vmatpush1.msra.mxu0 0.0
    %762 = vmatprep.subr.mxu0 0.0
    %763 = vmatpush1.msra.mxu0 0.0
    %764 = vmatprep.subr.mxu0 0.0
    %765 = vmatpush1.msra.mxu0 0.0
    %766 = vmatprep.subr.mxu0 0.0
    %767 = vmatpush1.msra.mxu0 0.0
    %768 = vmatprep.subr.mxu0 0.0
    %769 = vmatpush1.msra.mxu0 0.0
    %770 = vmatprep.subr.mxu0 0.0
    %771 = vmatpush1.msra.mxu0 0.0
    %772 = vmatprep.subr.mxu0 0.0
    %773 = vmatpush1.msra.mxu0 0.0
    %774 = vmatprep.subr.mxu0 0.0
    %775 = vmatpush1.msra.mxu0 0.0
    %776 = vmatprep.subr.mxu0 0.0
    %777 = vmatpush1.msra.mxu0 0.0
    %778 = vmatprep.subr.mxu0 0.0
    %779 = vmatpush1.msra.mxu0 0.0
    %780 = vmatprep.subr.mxu0 0.0
    %781 = vmatpush1.msra.mxu0 0.0
    %782 = vmatprep.subr.mxu0 0.0
    %783 = vmatpush1.msra.mxu0 0.0
    %784 = vmatprep.subr.mxu0 0.0
    %785 = vmatpush1.msra.mxu0 0.0
    %786 = vmatprep.mubr.f32.mxu0 0.0
    %787 = vmatmul.mubr.f32.gmra.mrb[0].mxu0 %v720
    %v788 = vpop.f32.mrb[0].mxu0
    %v789 = vadd.f32 0.0, %v788
    %v790 = vpop.f32.mrb[0].mxu0
    %791 = vdwg.mxu0
    %792 = vmatprep.subr.mxu0 0.0
    %793 = vmatpush1.msra.mxu0 %v710
    %794 = vmatprep.subr.mxu0 0.0
    %795 = vmatpush1.msra.mxu0 %v711
    %796 = vmatprep.subr.mxu0 0.0
    %797 = vmatpush1.msra.mxu0 %v712
    %798 = vmatprep.subr.mxu0 0.0
    %799 = vmatpush1.msra.mxu0 %v713
    %800 = vmatprep.subr.mxu0 0.0
    %801 = vmatpush1.msra.mxu0 0.0
    %802 = vmatprep.subr.mxu0 0.0
    %803 = vmatpush1.msra.mxu0 0.0
    %804 = vmatprep.subr.mxu0 0.0
    %805 = vmatpush1.msra.mxu0 0.0
    %806 = vmatprep.subr.mxu0 0.0
    %807 = vmatpush1.msra.mxu0 0.0
    %808 = vmatprep.subr.mxu0 0.0
    %809 = vmatpush1.msra.mxu0 0.0
    %810 = vmatprep.subr.mxu0 0.0
    %811 = vmatpush1.msra.mxu0 0.0
    %812 = vmatprep.subr.mxu0 0.0
    %813 = vmatpush1.msra.mxu0 0.0
    %814 = vmatprep.subr.mxu0 0.0
    %815 = vmatpush1.msra.mxu0 0.0
    %816 = vmatprep.subr.mxu0 0.0
    %817 = vmatpush1.msra.mxu0 0.0
    %818 = vmatprep.subr.mxu0 0.0
    %819 = vmatpush1.msra.mxu0 0.0
    %820 = vmatprep.subr.mxu0 0.0
    %821 = vmatpush1.msra.mxu0 0.0
    %822 = vmatprep.subr.mxu0 0.0
    %823 = vmatpush1.msra.mxu0 0.0
    %824 = vmatprep.subr.mxu0 0.0
    %825 = vmatpush1.msra.mxu0 0.0
    %826 = vmatprep.subr.mxu0 0.0
    %827 = vmatpush1.msra.mxu0 0.0
    %828 = vmatprep.subr.mxu0 0.0
    %829 = vmatpush1.msra.mxu0 0.0
    %830 = vmatprep.subr.mxu0 0.0
    %831 = vmatpush1.msra.mxu0 0.0
    %832 = vmatprep.subr.mxu0 0.0
    %833 = vmatpush1.msra.mxu0 0.0
    %834 = vmatprep.subr.mxu0 0.0
    %835 = vmatpush1.msra.mxu0 0.0
    %836 = vmatprep.subr.mxu0 0.0
    %837 = vmatpush1.msra.mxu0 0.0
    %838 = vmatprep.subr.mxu0 0.0
    %839 = vmatpush1.msra.mxu0 0.0
    %840 = vmatprep.subr.mxu0 0.0
    %841 = vmatpush1.msra.mxu0 0.0
    %842 = vmatprep.subr.mxu0 0.0
    %843 = vmatpush1.msra.mxu0 0.0
    %844 = vmatprep.subr.mxu0 0.0
    %845 = vmatpush1.msra.mxu0 0.0
    %846 = vmatprep.subr.mxu0 0.0
    %847 = vmatpush1.msra.mxu0 0.0
    %848 = vmatprep.subr.mxu0 0.0
    %849 = vmatpush1.msra.mxu0 0.0
    %850 = vmatprep.subr.mxu0 0.0
    %851 = vmatpush1.msra.mxu0 0.0
    %852 = vmatprep.subr.mxu0 0.0
    %853 = vmatpush1.msra.mxu0 0.0
    %854 = vmatprep.subr.mxu0 0.0
    %855 = vmatpush1.msra.mxu0 0.0
    %856 = vmatprep.mubr.f32.mxu0 0.0
    %857 = vmatmul.mubr.f32.gmra.mrb[0].mxu0 %v38
    %v858 = vpop.f32.mrb[0].mxu0
    %v859 = vadd.f32 %v789, %v858
    %v860 = vpop.f32.mrb[0].mxu0
    %861 = vdwg.mxu0
    %v862 = vld [vmem:[%s5] sm:$0x1]
    %v864 = vlaneseq
    %v865 = vshrl.u32 %v864, 7
    %v866 = vsub.s32 0, %v865
    %v867 = vrot.slane %v862, %v866
    %v869 = vadd.f32 %v859, %v867
    %v870 = vand.u32 2147483647, %v869
    %v871 = vsub.f32 0.0, %v870
    %v872 = vmul.f32 %v871, 1.442695
    %v873 = vpow.pop %v872
    %v874 = vadd.f32 %v873, 1.0
    %v875 = vrcp.pop %v874
    %vm876 = vcmp.ge.f32.partialorder %v869, 0.0
    %v877 = vmul.f32 %v873, %v875
    %v878 = vsel %vm876, %v875, %v877
    %v879 = vmul.f32 %v878, %v709
    %vm880 = vcmask 254976
    %881 = vst.msk [vmem:[#allocation2] sm:$0x3] %vm880, %v879
    // Predicated region
    $region26: #{_lambda_.1} parent=1 // pred_check
      _
    $region27: #{_lambda_.1} parent=1 // pred_check_branch
      %883 = sbr.rel (0) target = $region29
    $region28: #{_lambda_.1} parent=1 // pred_region
      %s885 = ssub.s32 32, 32
      %886 = vsyncadd [#allocation3], %s885
      %s888 = sshll.u32 [#allocation2], 4
      %s889 = int_to_ptr.vmem [resolvable:$true] %s888
      %891 = dma.vmem_to_hbm [thread:$0]  %s889, 32, %s6, [#allocation3]
    $region29: #{_lambda_.1} parent=1 // pred_fallthru
      _
    // Predicated region
    $region30: #{_lambda_.1} parent=1 // pred_check
      _
    $region31: #{_lambda_.1} parent=1 // pred_check_branch
      %893 = sbr.rel (0) target = $region33
    $region32: #{_lambda_.1} parent=1 // pred_region
      %894 = dma.done [#allocation3], 32
    $region33: #{_lambda_.1} parent=1 // pred_fallthru
      _
    %895 = vsyncpa [#allocation3], 1

</llo_original>
